<compile_context>
chip_gen: v7x
topology: tpu7x:2x2x1
jax: 0.10.0
libtpu: 0.0.40
codegen_flags: <defaults>
</compile_context>

<pallas_src>
import math
import functools

import jax
import jax.numpy as jnp
from jax import lax
from jax.experimental import pallas as pl
from jax.experimental.pallas import tpu as pltpu

EPS = 1e-8
PAD = 1  # Conv1d(padding=1), fixed in the module


def _round_up(x, m):
    return ((x + m - 1) // m) * m


def _qa_cosine_kernel(q_ref, a_ref, w_ref, b_ref, out_ref, *,
                      seq_len, lq_valid, la_valid, batch_tile, kernel_size):
    """Fused conv(pad=1) + max-over-time + tanh + cosine for one batch tile.

    q_ref  : (batch_tile*seq_len, E)  flattened, zero-padded question embeddings
    a_ref  : (batch_tile*seq_len, E)  flattened, zero-padded answer embeddings
    w_ref  : (K*E, F)                 im2col conv weights (torch (F,E,K) -> (K,E,F) -> (K*E,F))
    b_ref  : (1, F)                   conv bias
    out_ref: (batch_tile, 1, 128)     lane-dense cosine output (value broadcast over lanes)
    """
    E = q_ref.shape[-1]
    tb = batch_tile
    n = 2 * tb * seq_len

    # Fuse the two branches on the flattened batch*time axis.
    x = jnp.concatenate([q_ref[...], a_ref[...]], axis=0)            # (n, E)

    # im2col: K shifted copies concatenated on the lane axis.  The conv's zero padding
    # and the per-sequence boundaries of the flat layout are handled by masking.
    local = lax.broadcasted_iota(jnp.int32, (n, 1), 0) % seq_len     # position within sequence
    taps = []
    for k in range(kernel_size):
        d = k - PAD
        if d < 0:
            shifted = jnp.concatenate(
                [jnp.zeros((-d, E), jnp.float32), x[: n + d, :]], axis=0)
        elif d > 0:
            shifted = jnp.concatenate(
                [x[d:, :], jnp.zeros((d, E), jnp.float32)], axis=0)
        else:
            shifted = x
        valid = (local + d >= 0) & (local + d < seq_len)
        taps.append(jnp.where(valid, shifted, 0.0))
    patches = jnp.concatenate(taps, axis=-1)                          # (n, K*E)

    # Single MXU matmul for both branches and all time positions of this tile.
    conv = jnp.dot(patches, w_ref[...],
                   preferred_element_type=jnp.float32) + b_ref[...]   # (n, F)

    # Max over valid time positions + tanh, per sequence.  Valid lengths are static,
    # so padded time rows are simply excluded by the slice.
    rows = []
    for s in range(2 * tb):
        l_valid = lq_valid if s < tb else la_valid
        seg = conv[s * seq_len: s * seq_len + l_valid, :]
        rows.append(jnp.max(seg, axis=0, keepdims=True))              # (1, F)
    r = jnp.tanh(jnp.concatenate(rows, axis=0))                       # (2*tb, F)

    rq = r[:tb, :]
    ra = r[tb:, :]
    dot = jnp.sum(rq * ra, axis=1, keepdims=True)                     # (tb, 1)
    nq2 = jnp.sum(rq * rq, axis=1, keepdims=True)
    na2 = jnp.sum(ra * ra, axis=1, keepdims=True)
    # cos = dot / max(|rq|*|ra|, eps), computed with an EUP rsqrt instead of sqrt + divide.
    cos = dot * lax.rsqrt(jnp.maximum(nq2 * na2, EPS * EPS))          # (tb, 1)

    out_ref[...] = jnp.broadcast_to(cos[:, :, None], out_ref.shape)


def init_params(key, vocab_size, embedding_size, convolutional_filters, context_len):
    k_emb, k_w, k_b = jax.random.split(key, 3)
    # nn.Embedding(vocab_size+1, E, padding_idx=0): N(0,1) init, row 0 zeroed.
    emb = jax.random.normal(k_emb, (vocab_size + 1, embedding_size), jnp.float32)
    emb = emb.at[0].set(0.0)
    # nn.Conv1d(E, F, K): kaiming_uniform(a=sqrt(5)) -> U(-1/sqrt(fan_in), 1/sqrt(fan_in))
    fan_in = embedding_size * context_len
    bound = 1.0 / math.sqrt(fan_in)
    # torch weight is (F, E, K); we store it as (K, E, F) for the kernel.
    w = jax.random.uniform(k_w, (context_len, embedding_size, convolutional_filters),
                           jnp.float32, minval=-bound, maxval=bound)
    b = jax.random.uniform(k_b, (convolutional_filters,), jnp.float32,
                           minval=-bound, maxval=bound)
    return {"embedding": emb, "conv_w": w, "conv_b": b}


@functools.partial(jax.jit, static_argnames=("batch_block",))
def classic_qa_forward(questions, answers, embedding, conv_w, conv_b, *, batch_block=None):
    K, E, F = conv_w.shape
    B, Lq = questions.shape
    _, La = answers.shape

    tb = B if batch_block is None else int(batch_block)
    assert B % tb == 0, "batch_block must divide the batch size"

    # PyTorch Conv1d(k, padding=1) output lengths.
    lq_out = Lq + 2 * PAD - K + 1
    la_out = La + 2 * PAD - K + 1

    # Common, sublane-aligned time buffer (extra rows are zero and never enter the max).
    Lp = _round_up(max(Lq, La, lq_out, la_out), 8)

    # Embedding gather stays in XLA (glue); everything else lives in the kernel.
    q_emb = jnp.take(embedding, questions, axis=0)                    # (B, Lq, E)
    a_emb = jnp.take(embedding, answers, axis=0)                      # (B, La, E)
    q_flat = jnp.pad(q_emb, ((0, 0), (0, Lp - Lq), (0, 0))).reshape(B * Lp, E)
    a_flat = jnp.pad(a_emb, ((0, 0), (0, Lp - La), (0, 0))).reshape(B * Lp, E)

    w2 = conv_w.reshape(K * E, F).astype(jnp.float32)                 # im2col weight
    b2 = conv_b.reshape(1, F).astype(jnp.float32)

    kernel = functools.partial(
        _qa_cosine_kernel,
        seq_len=Lp, lq_valid=lq_out, la_valid=la_out,
        batch_tile=tb, kernel_size=K)

    out = pl.pallas_call(
        kernel,
        out_shape=jax.ShapeDtypeStruct((B, 1, 128), jnp.float32),
        grid=(B // tb,),
        in_specs=[
            pl.BlockSpec((tb * Lp, E), lambda i: (i, 0)),             # questions (flattened)
            pl.BlockSpec((tb * Lp, E), lambda i: (i, 0)),             # answers (flattened)
            pl.BlockSpec((K * E, F), lambda i: (0, 0)),               # im2col conv weight
            pl.BlockSpec((1, F), lambda i: (0, 0)),                   # conv bias
        ],
        out_specs=pl.BlockSpec((tb, 1, 128), lambda i: (i, 0, 0)),    # lane-dense output slab
        compiler_params=pltpu.CompilerParams(
            dimension_semantics=("parallel",)),
    )(q_flat, a_flat, w2, b2)
    return out[:, 0, 0]                                               # (B,) like torch output


def _reference(questions, answers, embedding, conv_w, conv_b):
    # Pure-JAX reference (same math as the PyTorch module, no Pallas).
    def branch(tok):
        x = jnp.take(embedding, tok, axis=0)                          # (B, L, E)
        x = jnp.pad(x, ((0, 0), (PAD, PAD), (0, 0)))
        K = conv_w.shape[0]
        L_out = x.shape[1] - K + 1
        acc = sum(jnp.einsum("ble,ef->blf", x[:, k:k + L_out, :], conv_w[k],
                             precision=jax.lax.Precision.HIGHEST)
                  for k in range(K)) + conv_b[None, None, :]
        return jnp.tanh(jnp.max(acc, axis=1))                         # (B, F)
    rq, ra = branch(questions), branch(answers)
    dot = jnp.sum(rq * ra, axis=1)
    return dot / jnp.maximum(jnp.linalg.norm(rq, axis=1) * jnp.linalg.norm(ra, axis=1), EPS)


if __name__ == "__main__":
    # Small shapes consistent with the module.
    vocab_size = 50
    embedding_size = 32
    convolutional_filters = 16
    context_len = 3
    B, Lq, La = 2, 10, 12

    key = jax.random.PRNGKey(0)
    k_params, k_q, k_a = jax.random.split(key, 3)
    params = init_params(k_params, vocab_size, embedding_size,
                         convolutional_filters, context_len)

    questions = jax.random.randint(k_q, (B, Lq), 0, vocab_size + 1, dtype=jnp.int32)
    answers = jax.random.randint(k_a, (B, La), 0, vocab_size + 1, dtype=jnp.int32)

    # batch_block=1 -> grid=(2,) so the "parallel" grid axis is actually exercised.
    out = classic_qa_forward(questions, answers,
                             params["embedding"], params["conv_w"], params["conv_b"],
                             batch_block=1)
    out = jax.block_until_ready(out)

    ref = _reference(questions, answers,
                     params["embedding"], params["conv_w"], params["conv_b"])
    assert out.shape == (B,)
    assert jnp.allclose(out, ref, rtol=1e-4, atol=1e-4), (out, ref)

    print("KERNEL_OK")
</pallas_src>

<mosaic_0001>
module attributes {stable_mosaic.version = 11 : i64} {
  func.func @_qa_cosine_kernel(%arg0: i32, %arg1: memref<16x32xf32, #tpu.memory_space<vmem>>, %arg2: memref<16x32xf32, #tpu.memory_space<vmem>>, %arg3: memref<96x16xf32, #tpu.memory_space<vmem>>, %arg4: memref<1x16xf32, #tpu.memory_space<vmem>>, %arg5: memref<1x1x128xf32, #tpu.memory_space<vmem>>) attributes {dimension_semantics = [#tpu.dimension_semantics<parallel>], iteration_bounds = array<i64: 2>, scalar_prefetch = 0 : i64, scratch_operands = 0 : i64, tpu.core_type = #tpu.core_type<tc>, window_params = [{transform_indices = @transform_0, window_bounds = array<i64: 16, 32>}, {transform_indices = @transform_1, window_bounds = array<i64: 16, 32>}, {pipeline_mode = #tpu.pipeline_mode<synchronous>, transform_indices = @transform_2, window_bounds = array<i64: 96, 16>}, {pipeline_mode = #tpu.pipeline_mode<synchronous>, transform_indices = @transform_3, window_bounds = array<i64: 1, 16>}, {transform_indices = @transform_4, window_bounds = array<i64: 1, 1, 128>}]} {
    %c0 = arith.constant 0 : index
    %c0_0 = arith.constant 0 : index
    %0 = vector.load %arg1[%c0, %c0_0] : memref<16x32xf32, #tpu.memory_space<vmem>>, vector<16x32xf32>
    %c0_1 = arith.constant 0 : index
    %c0_2 = arith.constant 0 : index
    %1 = vector.load %arg2[%c0_1, %c0_2] : memref<16x32xf32, #tpu.memory_space<vmem>>, vector<16x32xf32>
    %2 = tpu.concatenate %0, %1 in 0 : vector<16x32xf32>, vector<16x32xf32> -> vector<32x32xf32>
    %3 = tpu.iota {dimensions = array<i32: 0>} : vector<32x1xi32>
    %c16_i32 = arith.constant 16 : i32
    %c0_i32 = arith.constant 0 : i32
    %4 = arith.cmpi eq, %c16_i32, %c0_i32 : i32
    %c1_i32 = arith.constant 1 : i32
    %5 = arith.select %4, %c1_i32, %c16_i32 : i32
    %6 = vector.broadcast %5 : i32 to vector<32x1xi32>
    %7 = arith.remsi %3, %6 : vector<32x1xi32>
    %c0_i32_3 = arith.constant 0 : i32
    %8 = vector.broadcast %c0_i32_3 : i32 to vector<32x1xi32>
    %9 = arith.cmpi ne, %7, %8 : vector<32x1xi32>
    %c0_i32_4 = arith.constant 0 : i32
    %10 = vector.broadcast %c0_i32_4 : i32 to vector<32x1xi32>
    %11 = arith.cmpi slt, %7, %10 : vector<32x1xi32>
    %c0_i32_5 = arith.constant 0 : i32
    %12 = arith.cmpi slt, %5, %c0_i32_5 : i32
    %13 = vector.broadcast %12 : i1 to vector<32x1xi1>
    %14 = vector.broadcast %13 : vector<32x1xi1> to vector<32x1xi1>
    %15 = arith.xori %11, %14 : vector<32x1xi1>
    %16 = arith.andi %15, %9 : vector<32x1xi1>
    %17 = vector.broadcast %5 : i32 to vector<32x1xi32>
    %18 = arith.addi %7, %17 : vector<32x1xi32>
    %19 = arith.select %16, %18, %7 : vector<32x1xi1>, vector<32x1xi32>
    %cst = arith.constant 0.000000e+00 : f32
    %20 = vector.broadcast %cst : f32 to vector<1x32xf32>
    %21 = vector.extract_strided_slice %2 {offsets = [0, 0], sizes = [31, 32], strides = [1, 1]} : vector<32x32xf32> to vector<31x32xf32>
    %22 = tpu.concatenate %20, %21 in 0 : vector<1x32xf32>, vector<31x32xf32> -> vector<32x32xf32>
    %c-1_i32 = arith.constant -1 : i32
    %23 = vector.broadcast %c-1_i32 : i32 to vector<32x1xi32>
    %24 = arith.addi %19, %23 : vector<32x1xi32>
    %c0_i32_6 = arith.constant 0 : i32
    %25 = vector.broadcast %c0_i32_6 : i32 to vector<32x1xi32>
    %26 = arith.cmpi sge, %24, %25 : vector<32x1xi32>
    %c-1_i32_7 = arith.constant -1 : i32
    %27 = vector.broadcast %c-1_i32_7 : i32 to vector<32x1xi32>
    %28 = arith.addi %19, %27 : vector<32x1xi32>
    %c16_i32_8 = arith.constant 16 : i32
    %29 = vector.broadcast %c16_i32_8 : i32 to vector<32x1xi32>
    %30 = arith.cmpi slt, %28, %29 : vector<32x1xi32>
    %31 = arith.andi %26, %30 : vector<32x1xi1>
    %cst_9 = arith.constant 0.000000e+00 : f32
    %32 = vector.shape_cast %31 : vector<32x1xi1> to vector<32x1xi1>
    %33 = vector.broadcast %32 : vector<32x1xi1> to vector<32x32xi1>
    %34 = vector.broadcast %cst_9 : f32 to vector<32x32xf32>
    %35 = arith.select %33, %22, %34 : vector<32x32xi1>, vector<32x32xf32>
    %c0_i32_10 = arith.constant 0 : i32
    %36 = vector.broadcast %c0_i32_10 : i32 to vector<32x1xi32>
    %37 = arith.addi %19, %36 : vector<32x1xi32>
    %c0_i32_11 = arith.constant 0 : i32
    %38 = vector.broadcast %c0_i32_11 : i32 to vector<32x1xi32>
    %39 = arith.cmpi sge, %37, %38 : vector<32x1xi32>
    %c0_i32_12 = arith.constant 0 : i32
    %40 = vector.broadcast %c0_i32_12 : i32 to vector<32x1xi32>
    %41 = arith.addi %19, %40 : vector<32x1xi32>
    %c16_i32_13 = arith.constant 16 : i32
    %42 = vector.broadcast %c16_i32_13 : i32 to vector<32x1xi32>
    %43 = arith.cmpi slt, %41, %42 : vector<32x1xi32>
    %44 = arith.andi %39, %43 : vector<32x1xi1>
    %cst_14 = arith.constant 0.000000e+00 : f32
    %45 = vector.shape_cast %44 : vector<32x1xi1> to vector<32x1xi1>
    %46 = vector.broadcast %45 : vector<32x1xi1> to vector<32x32xi1>
    %47 = vector.broadcast %cst_14 : f32 to vector<32x32xf32>
    %48 = arith.select %46, %2, %47 : vector<32x32xi1>, vector<32x32xf32>
    %49 = vector.extract_strided_slice %2 {offsets = [1, 0], sizes = [31, 32], strides = [1, 1]} : vector<32x32xf32> to vector<31x32xf32>
    %cst_15 = arith.constant 0.000000e+00 : f32
    %50 = vector.broadcast %cst_15 : f32 to vector<1x32xf32>
    %51 = tpu.concatenate %49, %50 in 0 : vector<31x32xf32>, vector<1x32xf32> -> vector<32x32xf32>
    %c1_i32_16 = arith.constant 1 : i32
    %52 = vector.broadcast %c1_i32_16 : i32 to vector<32x1xi32>
    %53 = arith.addi %19, %52 : vector<32x1xi32>
    %c0_i32_17 = arith.constant 0 : i32
    %54 = vector.broadcast %c0_i32_17 : i32 to vector<32x1xi32>
    %55 = arith.cmpi sge, %53, %54 : vector<32x1xi32>
    %c1_i32_18 = arith.constant 1 : i32
    %56 = vector.broadcast %c1_i32_18 : i32 to vector<32x1xi32>
    %57 = arith.addi %19, %56 : vector<32x1xi32>
    %c16_i32_19 = arith.constant 16 : i32
    %58 = vector.broadcast %c16_i32_19 : i32 to vector<32x1xi32>
    %59 = arith.cmpi slt, %57, %58 : vector<32x1xi32>
    %60 = arith.andi %55, %59 : vector<32x1xi1>
    %cst_20 = arith.constant 0.000000e+00 : f32
    %61 = vector.shape_cast %60 : vector<32x1xi1> to vector<32x1xi1>
    %62 = vector.broadcast %61 : vector<32x1xi1> to vector<32x32xi1>
    %63 = vector.broadcast %cst_20 : f32 to vector<32x32xf32>
    %64 = arith.select %62, %51, %63 : vector<32x32xi1>, vector<32x32xf32>
    %65 = tpu.concatenate %35, %48, %64 in 1 : vector<32x32xf32>, vector<32x32xf32>, vector<32x32xf32> -> vector<32x96xf32>
    %c0_21 = arith.constant 0 : index
    %c0_22 = arith.constant 0 : index
    %66 = vector.load %arg3[%c0_21, %c0_22] : memref<96x16xf32, #tpu.memory_space<vmem>>, vector<96x16xf32>
    %cst_23 = arith.constant dense<0.000000e+00> : vector<32x16xf32>
    %67 = tpu.matmul %65, %66, %cst_23 {dimension_numbers = #tpu.dot_dimension_numbers<[1], [0], [0], [1], [0, 0, 1, 1], [], []>} : vector<32x96xf32>, vector<96x16xf32>, vector<32x16xf32> -> vector<32x16xf32>
    %c0_24 = arith.constant 0 : index
    %c0_25 = arith.constant 0 : index
    %68 = vector.load %arg4[%c0_24, %c0_25] : memref<1x16xf32, #tpu.memory_space<vmem>>, vector<1x16xf32>
    %69 = vector.broadcast %68 : vector<1x16xf32> to vector<32x16xf32>
    %70 = arith.addf %67, %69 : vector<32x16xf32>
    %71 = vector.extract_strided_slice %70 {offsets = [0, 0], sizes = [10, 16], strides = [1, 1]} : vector<32x16xf32> to vector<10x16xf32>
    %cst_26 = arith.constant dense<0xFF800000> : vector<16xf32>
    %72 = vector.multi_reduction <maximumf>, %71, %cst_26 [0] : vector<10x16xf32> to vector<16xf32>
    %73 = vector.shape_cast %72 : vector<16xf32> to vector<1x16xf32>
    %74 = vector.extract_strided_slice %70 {offsets = [16, 0], sizes = [12, 16], strides = [1, 1]} : vector<32x16xf32> to vector<12x16xf32>
    %cst_27 = arith.constant dense<0xFF800000> : vector<16xf32>
    %75 = vector.multi_reduction <maximumf>, %74, %cst_27 [0] : vector<12x16xf32> to vector<16xf32>
    %76 = vector.shape_cast %75 : vector<16xf32> to vector<1x16xf32>
    %77 = tpu.concatenate %73, %76 in 0 : vector<1x16xf32>, vector<1x16xf32> -> vector<2x16xf32>
    %78 = math.tanh %77 : vector<2x16xf32>
    %79 = vector.extract_strided_slice %78 {offsets = [0, 0], sizes = [1, 16], strides = [1, 1]} : vector<2x16xf32> to vector<1x16xf32>
    %80 = vector.extract_strided_slice %78 {offsets = [1, 0], sizes = [1, 16], strides = [1, 1]} : vector<2x16xf32> to vector<1x16xf32>
    %81 = arith.mulf %79, %80 : vector<1x16xf32>
    %cst_28 = arith.constant dense<0.000000e+00> : vector<1xf32>
    %82 = vector.multi_reduction <add>, %81, %cst_28 [1] : vector<1x16xf32> to vector<1xf32>
    %83 = vector.shape_cast %82 : vector<1xf32> to vector<1x1xf32>
    %84 = arith.mulf %79, %79 : vector<1x16xf32>
    %cst_29 = arith.constant dense<0.000000e+00> : vector<1xf32>
    %85 = vector.multi_reduction <add>, %84, %cst_29 [1] : vector<1x16xf32> to vector<1xf32>
    %86 = vector.shape_cast %85 : vector<1xf32> to vector<1x1xf32>
    %87 = arith.mulf %80, %80 : vector<1x16xf32>
    %cst_30 = arith.constant dense<0.000000e+00> : vector<1xf32>
    %88 = vector.multi_reduction <add>, %87, %cst_30 [1] : vector<1x16xf32> to vector<1xf32>
    %89 = vector.shape_cast %88 : vector<1xf32> to vector<1x1xf32>
    %90 = arith.mulf %86, %89 : vector<1x1xf32>
    %cst_31 = arith.constant 1.000000e-16 : f32
    %91 = vector.broadcast %cst_31 : f32 to vector<1x1xf32>
    %92 = arith.maximumf %90, %91 : vector<1x1xf32>
    %93 = math.rsqrt %92 : vector<1x1xf32>
    %94 = arith.mulf %83, %93 : vector<1x1xf32>
    %95 = vector.shape_cast %94 : vector<1x1xf32> to vector<1x1x1xf32>
    %96 = vector.shape_cast %95 : vector<1x1x1xf32> to vector<1x1x1xf32>
    %97 = vector.broadcast %96 : vector<1x1x1xf32> to vector<1x1x128xf32>
    %c0_32 = arith.constant 0 : index
    %c0_33 = arith.constant 0 : index
    %c0_34 = arith.constant 0 : index
    %98 = vector.load %arg5[%c0_32, %c0_33, %c0_34] : memref<1x1x128xf32, #tpu.memory_space<vmem>>, vector<1x1x128xf32>
    tpu.vector_store %arg5[%c0_32, %c0_33, %c0_34], %97 {strides = array<i32>} : memref<1x1x128xf32, #tpu.memory_space<vmem>>, vector<1x1x128xf32>,
    return
  }
  func.func @transform_0(%arg0: i32) -> (i32, i32) {
    %c0_i32 = arith.constant 0 : i32
    %c0_i32_0 = arith.constant 0 : i32
    return %arg0, %c0_i32 : i32, i32
  }
  func.func @transform_1(%arg0: i32) -> (i32, i32) {
    %c0_i32 = arith.constant 0 : i32
    %c0_i32_0 = arith.constant 0 : i32
    return %arg0, %c0_i32 : i32, i32
  }
  func.func @transform_2(%arg0: i32) -> (i32, i32) {
    %c0_i32 = arith.constant 0 : i32
    %c0_i32_0 = arith.constant 0 : i32
    %c0_i32_1 = arith.constant 0 : i32
    return %c0_i32, %c0_i32_0 : i32, i32
  }
  func.func @transform_3(%arg0: i32) -> (i32, i32) {
    %c0_i32 = arith.constant 0 : i32
    %c0_i32_0 = arith.constant 0 : i32
    %c0_i32_1 = arith.constant 0 : i32
    return %c0_i32, %c0_i32_0 : i32, i32
  }
  func.func @transform_4(%arg0: i32) -> (i32, i32, i32) {
    %c0_i32 = arith.constant 0 : i32
    %c0_i32_0 = arith.constant 0 : i32
    %c0_i32_1 = arith.constant 0 : i32
    return %arg0, %c0_i32, %c0_i32_0 : i32, i32, i32
  }
}

</mosaic_0001>

<llo_original>
// kernel: classic_qa_forward.1
$region0: #{classic_qa_forward.1}
  #allocation0 [shape = 'u32[]', space=smem, size = 0x4, offset = 0x4, fixed_abs, tag = 'smem constant byte address 0x4 - core index']
  #allocation1 [shape = 'u32[144,128]{1,0:T(1,128)}', space=vmem, size = 0x12000, scoped, tag = 'internal scratch']
  %s0 = inlined_call_operand.vmem [shape: f32[32,32], index: 0, kind: input, shape index: {}]
  %s1 = inlined_call_operand.vmem [shape: f32[32,32], index: 1, kind: input, shape index: {}]
  %s2 = inlined_call_operand.vmem [shape: f32[96,16], index: 2, kind: input, shape index: {}]
  %s3 = inlined_call_operand.vmem [shape: f32[1,16], index: 3, kind: input, shape index: {}]
  %s4 = inlined_call_operand.vmem [shape: f32[2,1,128], index: 4, kind: output, shape index: {}]
  %s5 = sld [smem:[#allocation0]]
  $region49: #{classic_qa_forward.1} parent=0
    _
  %s7 = ssub.s32 1, %s5
  %s8 = scalar_select 0, %s7, %s5
  loop: start=0, step=1, limit=4
  $region2: #{classic_qa_forward.1} parent=0 // loop_pre_header
    _
  $region3: #{classic_qa_forward.1} parent=0 // loop_header
    %s10 = sphi 0, %s14
    %p11 = scmp.ge.s32.totalorder %s10, 4
    %s20 = sphi 0, %s22
    %s23 = sphi 0, %s20
    %s24 = sphi 0, %s23
    %s40 = sphi 0, %s24
    %s46 = sphi 0, %s48
    %s49 = sphi 0, %s46
    %s50 = sphi 0, %s49
    %s66 = sphi 0, %s50
    %s70 = sphi 0, %s70
    %s72 = sphi 0, %s70
    %s73 = sphi 0, %s72
    %s87 = sphi 0, %s73
    %s91 = sphi 0, %s91
    %s93 = sphi 0, %s91
    %s94 = sphi 0, %s93
    %s108 = sphi 0, %s94
    %s114 = sphi 0, %s116
    %s117 = sphi 0, %s114
    %s118 = sphi 0, %s117
    %s134 = sphi 0, %s118
  $region4: #{classic_qa_forward.1} parent=0 // loop_header_branch
    %13 = sbr.rel (%p11) target = $region8
  $region5: #{classic_qa_forward.1} parent=0 // loop_body
    %s15 = ssub.s32 %s10, 1
    %s16 = ssub.s32 %s10, 2
    %s17 = sadd.s32 %s10, 1
    %s18 = ssub.s32 %s10, %s17
    %p19 = scmp.eq.s32.totalorder %s18, 0
    %s21 = sadd.s32 %s20, 1
    %s22 = scalar_select %p19, %s20, %s21
    %p25 = pneg %p19
    %p26 = scmp.eq.s32.totalorder %s10, 1
    %p27 = por %p25, %p26
    %p28 = scmp.ne.s32.totalorder %s20, %s23
    %p29 = scmp.eq.s32.totalorder %s10, 0
    %p30 = por %p28, %p29
    %p31 = scmp.ne.s32.totalorder %s20, %s23
    %p32 = scmp.eq.s32.totalorder %s15, 1
    %p33 = por %p31, %p32
    %p34 = scmp.ne.s32.totalorder %s23, %s24
    %p35 = scmp.eq.s32.totalorder %s15, 0
    %p36 = por %p34, %p35
    %p37 = scmp.ne.s32.totalorder %s23, %s24
    %p38 = scmp.eq.s32.totalorder %s16, 1
    %p39 = por %p37, %p38
    %p41 = scmp.ne.s32.totalorder %s24, %s40
    %p42 = scmp.eq.s32.totalorder %s16, 0
    %p43 = por %p41, %p42
    %s44 = ssub.s32 %s10, %s17
    %p45 = scmp.eq.s32.totalorder %s44, 0
    %s47 = sadd.s32 %s46, 1
    %s48 = scalar_select %p45, %s46, %s47
    %p51 = pneg %p45
    %p52 = scmp.eq.s32.totalorder %s10, 1
    %p53 = por %p51, %p52
    %p54 = scmp.ne.s32.totalorder %s46, %s49
    %p55 = scmp.eq.s32.totalorder %s10, 0
    %p56 = por %p54, %p55
    %p57 = scmp.ne.s32.totalorder %s46, %s49
    %p58 = scmp.eq.s32.totalorder %s15, 1
    %p59 = por %p57, %p58
    %p60 = scmp.ne.s32.totalorder %s49, %s50
    %p61 = scmp.eq.s32.totalorder %s15, 0
    %p62 = por %p60, %p61
    %p63 = scmp.ne.s32.totalorder %s49, %s50
    %p64 = scmp.eq.s32.totalorder %s16, 1
    %p65 = por %p63, %p64
    %p67 = scmp.ne.s32.totalorder %s50, %s66
    %p68 = scmp.eq.s32.totalorder %s16, 0
    %p69 = por %p67, %p68
    %s71 = sadd.s32 %s70, 1
    %p74 = scmp.eq.s32.totalorder %s10, 1
    %p75 = scmp.ne.s32.totalorder %s70, %s72
    %p76 = scmp.eq.s32.totalorder %s10, 0
    %p77 = por %p75, %p76
    %p78 = scmp.ne.s32.totalorder %s70, %s72
    %p79 = scmp.eq.s32.totalorder %s15, 1
    %p80 = por %p78, %p79
    %p81 = scmp.ne.s32.totalorder %s72, %s73
    %p82 = scmp.eq.s32.totalorder %s15, 0
    %p83 = por %p81, %p82
    %p84 = scmp.ne.s32.totalorder %s72, %s73
    %p85 = scmp.eq.s32.totalorder %s16, 1
    %p86 = por %p84, %p85
    %p88 = scmp.ne.s32.totalorder %s73, %s87
    %p89 = scmp.eq.s32.totalorder %s16, 0
    %p90 = por %p88, %p89
    %s92 = sadd.s32 %s91, 1
    %p95 = scmp.eq.s32.totalorder %s10, 1
    %p96 = scmp.ne.s32.totalorder %s91, %s93
    %p97 = scmp.eq.s32.totalorder %s10, 0
    %p98 = por %p96, %p97
    %p99 = scmp.ne.s32.totalorder %s91, %s93
    %p100 = scmp.eq.s32.totalorder %s15, 1
    %p101 = por %p99, %p100
    %p102 = scmp.ne.s32.totalorder %s93, %s94
    %p103 = scmp.eq.s32.totalorder %s15, 0
    %p104 = por %p102, %p103
    %p105 = scmp.ne.s32.totalorder %s93, %s94
    %p106 = scmp.eq.s32.totalorder %s16, 1
    %p107 = por %p105, %p106
    %p109 = scmp.ne.s32.totalorder %s94, %s108
    %p110 = scmp.eq.s32.totalorder %s16, 0
    %p111 = por %p109, %p110
    %s112 = ssub.s32 %s10, %s17
    %p113 = scmp.eq.s32.totalorder %s112, 0
    %s115 = sadd.s32 %s114, 1
    %s116 = scalar_select %p113, %s114, %s115
    %p119 = pneg %p113
    %p120 = scmp.eq.s32.totalorder %s10, 1
    %p121 = por %p119, %p120
    %p122 = scmp.ne.s32.totalorder %s114, %s117
    %p123 = scmp.eq.s32.totalorder %s10, 0
    %p124 = por %p122, %p123
    %p125 = scmp.ne.s32.totalorder %s114, %s117
    %p126 = scmp.eq.s32.totalorder %s15, 1
    %p127 = por %p125, %p126
    %p128 = scmp.ne.s32.totalorder %s117, %s118
    %p129 = scmp.eq.s32.totalorder %s15, 0
    %p130 = por %p128, %p129
    %p131 = scmp.ne.s32.totalorder %s117, %s118
    %p132 = scmp.eq.s32.totalorder %s16, 1
    %p133 = por %p131, %p132
    %p135 = scmp.ne.s32.totalorder %s118, %s134
    %p136 = scmp.eq.s32.totalorder %s16, 0
    %p137 = por %p135, %p136
    %p138 = scmp.le.s32.totalorder 1, %s10
    %p139 = scmp.lt.s32.totalorder %s10, 3
    %p140 = pnand %p138, %p139
    %p141 = pneg %p140
    // Predicated region
    $region9: #{classic_qa_forward.1} parent=5 // pred_check
      _
    $region10: #{classic_qa_forward.1} parent=5 // pred_check_branch
      %143 = sbr.rel (%p140) target = $region12
    $region11: #{classic_qa_forward.1} parent=5 // pred_region
      %s144 = ssub.s32 %s10, 1
      // Predicated region
      $region13: #{classic_qa_forward.1} parent=11 // pred_check
        %p145 = pneg %p83
      $region14: #{classic_qa_forward.1} parent=11 // pred_check_branch
        %147 = sbr.rel (%p145) target = $region16
      $region15: #{classic_qa_forward.1} parent=11 // pred_region
        _
      $region16: #{classic_qa_forward.1} parent=11 // pred_fallthru
        _
      // Predicated region
      $region17: #{classic_qa_forward.1} parent=11 // pred_check
        %p148 = pneg %p104
      $region18: #{classic_qa_forward.1} parent=11 // pred_check_branch
        %150 = sbr.rel (%p148) target = $region20
      $region19: #{classic_qa_forward.1} parent=11 // pred_region
        _
      $region20: #{classic_qa_forward.1} parent=11 // pred_fallthru
        _
    $region12: #{classic_qa_forward.1} parent=5 // pred_fallthru
      _
    %p151 = scmp.lt.s32.totalorder %s10, 2
    // Predicated region
    $region21: #{classic_qa_forward.1} parent=5 // pred_check
      %p152 = pneg %p151
    $region22: #{classic_qa_forward.1} parent=5 // pred_check_branch
      %154 = sbr.rel (%p152) target = $region24
    $region23: #{classic_qa_forward.1} parent=5 // pred_region
      // Predicated region
      $region25: #{classic_qa_forward.1} parent=23 // pred_check
        %p155 = pneg %p30
      $region26: #{classic_qa_forward.1} parent=23 // pred_check_branch
        %157 = sbr.rel (%p155) target = $region28
      $region27: #{classic_qa_forward.1} parent=23 // pred_region
        %s158 = smul.u32 2, %s10
        %p159 = scmp.lt.s32.totalorder %s158, 3
        %s160 = scalar_select %p159, %s158, 3
        %s161 = smul.addr %s160, 8
        %s162 = scalar_lea.vmem %s0, %s161
        %s163 = smul.u32 2, %s10
      $region28: #{classic_qa_forward.1} parent=23 // pred_fallthru
        _
      // Predicated region
      $region29: #{classic_qa_forward.1} parent=23 // pred_check
        %p164 = pneg %p56
      $region30: #{classic_qa_forward.1} parent=23 // pred_check_branch
        %166 = sbr.rel (%p164) target = $region32
      $region31: #{classic_qa_forward.1} parent=23 // pred_region
        %s167 = smul.u32 2, %s10
        %p168 = scmp.lt.s32.totalorder %s167, 3
        %s169 = scalar_select %p168, %s167, 3
        %s170 = smul.addr %s169, 8
        %s171 = scalar_lea.vmem %s1, %s170
        %s172 = smul.u32 2, %s10
      $region32: #{classic_qa_forward.1} parent=23 // pred_fallthru
        _
    $region24: #{classic_qa_forward.1} parent=5 // pred_fallthru
      _
    %p173 = scmp.le.s32.totalorder 1, %s10
    %p174 = scmp.lt.s32.totalorder %s10, 3
    %p175 = pnand %p173, %p174
    %p176 = pneg %p175
    // Predicated region
    $region33: #{classic_qa_forward.1} parent=5 // pred_check
      _
    $region34: #{classic_qa_forward.1} parent=5 // pred_check_branch
      %178 = sbr.rel (%p175) target = $region36
    $region35: #{classic_qa_forward.1} parent=5 // pred_region
      %s179 = ssub.s32 %s10, 1
      %s180 = smul.u32 2, %s15
      %p181 = scmp.lt.s32.totalorder %s180, 3
      %s182 = scalar_select %p181, %s180, 3
      %s183 = smul.addr %s182, 8
      %s184 = scalar_lea.vmem %s0, %s183
      %p185 = pneg %p36
      %p186 = pneg %p33
      %s187 = smul.u32 2, %s15
      %p188 = scmp.lt.s32.totalorder %s187, 3
      %s189 = scalar_select %p188, %s187, 3
      %s190 = smul.addr %s189, 8
      %s191 = scalar_lea.vmem %s1, %s190
      %p192 = pneg %p62
      %p193 = pneg %p59
      %p194 = pneg %p83
      %p195 = pneg %p80
      %p196 = pneg %p104
      %p197 = pneg %p101
      %p198 = pneg %p130
      %p199 = pneg %p127
      %p200 = scmp.lt.s32.totalorder %s15, 1
      %s201 = scalar_select %p200, %s15, 1
      %s202 = scalar_lea.vmem %s4, %s201
      %s203 = smul.u32 2, %s15
      %p204 = scmp.lt.s32.totalorder %s203, 3
      %s205 = scalar_select %p204, %s203, 3
      %s206 = smul.addr %s205, 8
      %s207 = scalar_lea.vmem %s0, %s206
      %s208 = smul.u32 2, %s15
      %s209 = smul.u32 2, %s15
      %p210 = scmp.lt.s32.totalorder %s209, 3
      %s211 = scalar_select %p210, %s209, 3
      %s212 = smul.addr %s211, 8
      %s213 = scalar_lea.vmem %s1, %s212
      %s214 = smul.u32 2, %s15
      %p215 = scmp.lt.s32.totalorder %s15, 1
      %s216 = scalar_select %p215, %s15, 1
      %s217 = scalar_lea.vmem %s4, %s216
      %v218 = vld [vmem:[%s207] sm:$0xff]
      %v219 = vld [vmem:[%s207 + $0x8] sm:$0xff]
      %v220 = vld [vmem:[%s213] sm:$0xff]
      %v221 = vld [vmem:[%s213 + $0x8] sm:$0xff]
      %v222 = vlaneseq
      %v223 = vshrl.u32 %v222, 7
      %v224 = vadd.s32 %v223, 8
      %v225 = vadd.s32 %v223, 16
      %v226 = vadd.s32 %v223, 24
      %vm227 = vcmp.lt.s32.totalorder %v223, 0
      %v228 = vsub.s32 0, %v223
      %v229 = vsel %vm227, %v228, %v223
      %v230 = vshrl.u32 %v229, 4
      %v231 = vand.u32 %v229, 15
      %v232 = vsub.s32 0, %v231
      %v233 = vsel %vm227, %v232, %v231
      %vm234 = vcmp.lt.s32.totalorder %v224, 0
      %v235 = vsub.s32 0, %v224
      %v236 = vsel %vm234, %v235, %v224
      %v237 = vshrl.u32 %v236, 4
      %v238 = vand.u32 %v236, 15
      %v239 = vsub.s32 0, %v238
      %v240 = vsel %vm234, %v239, %v238
      %vm241 = vcmp.lt.s32.totalorder %v225, 0
      %v242 = vsub.s32 0, %v225
      %v243 = vsel %vm241, %v242, %v225
      %v244 = vshrl.u32 %v243, 4
      %v245 = vand.u32 %v243, 15
      %v246 = vsub.s32 0, %v245
      %v247 = vsel %vm241, %v246, %v245
      %vm248 = vcmp.lt.s32.totalorder %v226, 0
      %v249 = vsub.s32 0, %v226
      %v250 = vsel %vm248, %v249, %v226
      %v251 = vshrl.u32 %v250, 4
      %v252 = vand.u32 %v250, 15
      %v253 = vsub.s32 0, %v252
      %v254 = vsel %vm248, %v253, %v252
      %vm255 = vcmp.ne.s32.totalorder %v233, 0
      %vm256 = vcmp.ne.s32.totalorder %v240, 0
      %vm257 = vcmp.ne.s32.totalorder %v247, 0
      %vm258 = vcmp.ne.s32.totalorder %v254, 0
      %vm259 = vcmp.lt.s32.totalorder %v233, 0
      %vm260 = vcmp.lt.s32.totalorder %v240, 0
      %vm261 = vcmp.lt.s32.totalorder %v247, 0
      %vm262 = vcmp.lt.s32.totalorder %v254, 0
      %vm263 = vmand %vm259, %vm255
      %vm264 = vmand %vm260, %vm256
      %vm265 = vmand %vm261, %vm257
      %vm266 = vmand %vm262, %vm258
      %v267 = vadd.s32 %v233, 16
      %v268 = vadd.s32 %v240, 16
      %v269 = vadd.s32 %v247, 16
      %v270 = vadd.s32 %v254, 16
      %v271 = vsel %vm263, %v267, %v233
      %v272 = vsel %vm264, %v268, %v240
      %v273 = vsel %vm265, %v269, %v247
      %v274 = vsel %vm266, %v270, %v254
      %vm279 = vcmask 1040384
      %v280 = vrot.slane %v218, 7
      %v281 = vrot.slane %v219, 7
      %v282 = vsel %vm279, %v280, %v281
      %v283 = vrot.slane %v220, 7
      %v284 = vsel %vm279, %v281, %v283
      %v285 = vrot.slane %v221, 7
      %v286 = vsel %vm279, %v283, %v285
      %v291 = vsel %vm279, 0.0, %v280
      %v292 = vadd.s32 %v271, 4294967295
      %v293 = vadd.s32 %v272, 4294967295
      %v294 = vadd.s32 %v273, 4294967295
      %v295 = vadd.s32 %v274, 4294967295
      %vm296 = vcmp.ge.s32.totalorder %v292, 0
      %vm297 = vcmp.ge.s32.totalorder %v293, 0
      %vm298 = vcmp.ge.s32.totalorder %v294, 0
      %vm299 = vcmp.ge.s32.totalorder %v295, 0
      %vm300 = vcmp.lt.s32.totalorder %v292, 16
      %vm301 = vcmp.lt.s32.totalorder %v293, 16
      %vm302 = vcmp.lt.s32.totalorder %v294, 16
      %vm303 = vcmp.lt.s32.totalorder %v295, 16
      %vm304 = vmand %vm296, %vm300
      %vm305 = vmand %vm297, %vm301
      %vm306 = vmand %vm298, %vm302
      %vm307 = vmand %vm299, %vm303
      %v308 = vsel %vm304, 1, 0
      %v309 = vsel %vm305, 1, 0
      %v310 = vsel %vm306, 1, 0
      %v311 = vsel %vm307, 1, 0
      %vm312 = vcmp.eq.s32.totalorder %v308, 1
      %vm313 = vcmp.eq.s32.totalorder %v309, 1
      %vm314 = vcmp.eq.s32.totalorder %v310, 1
      %vm315 = vcmp.eq.s32.totalorder %v311, 1
      %v316 = vsel %vm312, %v291, 0.0
      %v317 = vsel %vm313, %v282, 0.0
      %v318 = vsel %vm314, %v284, 0.0
      %v319 = vsel %vm315, %v286, 0.0
      %vm320 = vcmp.ge.s32.totalorder %v271, 0
      %vm321 = vcmp.ge.s32.totalorder %v272, 0
      %vm322 = vcmp.ge.s32.totalorder %v273, 0
      %vm323 = vcmp.ge.s32.totalorder %v274, 0
      %vm324 = vcmp.lt.s32.totalorder %v271, 16
      %vm325 = vcmp.lt.s32.totalorder %v272, 16
      %vm326 = vcmp.lt.s32.totalorder %v273, 16
      %vm327 = vcmp.lt.s32.totalorder %v274, 16
      %vm328 = vmand %vm320, %vm324
      %vm329 = vmand %vm321, %vm325
      %vm330 = vmand %vm322, %vm326
      %vm331 = vmand %vm323, %vm327
      %v332 = vsel %vm328, 1, 0
      %v333 = vsel %vm329, 1, 0
      %v334 = vsel %vm330, 1, 0
      %v335 = vsel %vm331, 1, 0
      %vm336 = vcmp.eq.s32.totalorder %v332, 1
      %vm337 = vcmp.eq.s32.totalorder %v333, 1
      %vm338 = vcmp.eq.s32.totalorder %v334, 1
      %vm339 = vcmp.eq.s32.totalorder %v335, 1
      %v340 = vsel %vm336, %v218, 0.0
      %v341 = vsel %vm337, %v219, 0.0
      %v342 = vsel %vm338, %v220, 0.0
      %v343 = vsel %vm339, %v221, 0.0
      %vm344 = vcmask 1046528
      %v345 = vrot.slane %v218, 1
      %v346 = vrot.slane %v219, 1
      %v347 = vsel %vm344, %v345, %v346
      %v348 = vrot.slane %v220, 1
      %v349 = vsel %vm344, %v346, %v348
      %v350 = vrot.slane %v221, 1
      %v351 = vsel %vm344, %v348, %v350
      %v356 = vsel %vm344, %v350, 0.0
      %v357 = vadd.s32 %v271, 1
      %v358 = vadd.s32 %v272, 1
      %v359 = vadd.s32 %v273, 1
      %v360 = vadd.s32 %v274, 1
      %vm361 = vcmp.ge.s32.totalorder %v357, 0
      %vm362 = vcmp.ge.s32.totalorder %v358, 0
      %vm363 = vcmp.ge.s32.totalorder %v359, 0
      %vm364 = vcmp.ge.s32.totalorder %v360, 0
      %vm365 = vcmp.lt.s32.totalorder %v357, 16
      %vm366 = vcmp.lt.s32.totalorder %v358, 16
      %vm367 = vcmp.lt.s32.totalorder %v359, 16
      %vm368 = vcmp.lt.s32.totalorder %v360, 16
      %vm369 = vmand %vm361, %vm365
      %vm370 = vmand %vm362, %vm366
      %vm371 = vmand %vm363, %vm367
      %vm372 = vmand %vm364, %vm368
      %v373 = vsel %vm369, 1, 0
      %v374 = vsel %vm370, 1, 0
      %v375 = vsel %vm371, 1, 0
      %v376 = vsel %vm372, 1, 0
      %vm377 = vcmp.eq.s32.totalorder %v373, 1
      %vm378 = vcmp.eq.s32.totalorder %v374, 1
      %vm379 = vcmp.eq.s32.totalorder %v375, 1
      %vm380 = vcmp.eq.s32.totalorder %v376, 1
      %v381 = vsel %vm377, %v347, 0.0
      %v382 = vsel %vm378, %v349, 0.0
      %v383 = vsel %vm379, %v351, 0.0
      %v384 = vsel %vm380, %v356, 0.0
      %389 = vrot.lane.b32.xlu0 %v340, 32
      %v390 = vpop.permute.xlu0 %389
      %391 = vrot.lane.b32.xlu0 %v341, 32
      %v392 = vpop.permute.xlu0 %391
      %393 = vrot.lane.b32.xlu0 %v342, 32
      %v394 = vpop.permute.xlu0 %393
      %395 = vrot.lane.b32.xlu0 %v343, 32
      %v396 = vpop.permute.xlu0 %395
      %405 = vrot.lane.b32.xlu0 %v381, 64
      %v406 = vpop.permute.xlu0 %405
      %407 = vrot.lane.b32.xlu0 %v382, 64
      %v408 = vpop.permute.xlu0 %407
      %409 = vrot.lane.b32.xlu0 %v383, 64
      %v410 = vpop.permute.xlu0 %409
      %411 = vrot.lane.b32.xlu0 %v384, 64
      %v412 = vpop.permute.xlu0 %411
      %vm417 = vcmask 261120
      %v418 = vsel %vm417, %v316, %v390
      %v419 = vsel %vm417, %v317, %v392
      %v420 = vsel %vm417, %v318, %v394
      %v421 = vsel %vm417, %v319, %v396
      %vm422 = vcmask 523264
      %v423 = vsel %vm422, %v418, %v406
      %v424 = vsel %vm422, %v419, %v408
      %v425 = vsel %vm422, %v420, %v410
      %v426 = vsel %vm422, %v421, %v412
      %v427 = vld [vmem:[%s2] sm:$0xff]
      %v428 = vld [vmem:[%s2 + $0x8] sm:$0xff]
      %v429 = vld [vmem:[%s2 + $0x10] sm:$0xff]
      %v430 = vld [vmem:[%s2 + $0x18] sm:$0xff]
      %v431 = vld [vmem:[%s2 + $0x20] sm:$0xff]
      %v432 = vld [vmem:[%s2 + $0x28] sm:$0xff]
      %v433 = vld [vmem:[%s2 + $0x30] sm:$0xff]
      %v434 = vld [vmem:[%s2 + $0x38] sm:$0xff]
      %v435 = vld [vmem:[%s2 + $0x40] sm:$0xff]
      %v436 = vld [vmem:[%s2 + $0x48] sm:$0xff]
      %v437 = vld [vmem:[%s2 + $0x50] sm:$0xff]
      %v438 = vld [vmem:[%s2 + $0x58] sm:$0xff]
      %v439 = vld [vmem:[%s3] sm:$0x1]
      %v441 = vlaneseq
      %v442 = vshrl.u32 %v441, 7
      %v443 = vsub.s32 0, %v442
      %v444 = vrot.slane %v439, %v443
      %vm446 = vcmask 785408
      %v448 = vsel %vm446, %v423, 0
      %v451 = vsel %vm446, %v424, 0
      %v454 = vsel %vm446, %v425, 0
      %v457 = vsel %vm446, %v426, 0
      %459 = vmatprep.subr.mxu0 0.0
      %460 = vmatpush1.msra.mxu0 %v427
      %461 = vmatprep.subr.mxu0 0.0
      %462 = vmatpush1.msra.mxu0 %v428
      %463 = vmatprep.subr.mxu0 0.0
      %464 = vmatpush1.msra.mxu0 %v429
      %465 = vmatprep.subr.mxu0 0.0
      %466 = vmatpush1.msra.mxu0 %v430
      %467 = vmatprep.subr.mxu0 0.0
      %468 = vmatpush1.msra.mxu0 %v431
      %469 = vmatprep.subr.mxu0 0.0
      %470 = vmatpush1.msra.mxu0 %v432
      %471 = vmatprep.subr.mxu0 0.0
      %472 = vmatpush1.msra.mxu0 %v433
      %473 = vmatprep.subr.mxu0 0.0
      %474 = vmatpush1.msra.mxu0 %v434
      %475 = vmatprep.subr.mxu0 0.0
      %476 = vmatpush1.msra.mxu0 %v435
      %477 = vmatprep.subr.mxu0 0.0
      %478 = vmatpush1.msra.mxu0 %v436
      %479 = vmatprep.subr.mxu0 0.0
      %480 = vmatpush1.msra.mxu0 %v437
      %481 = vmatprep.subr.mxu0 0.0
      %482 = vmatpush1.msra.mxu0 %v438
      %483 = vmatprep.subr.mxu0 0.0
      %484 = vmatpush1.msra.mxu0 0.0
      %485 = vmatprep.subr.mxu0 0.0
      %486 = vmatpush1.msra.mxu0 0.0
      %487 = vmatprep.subr.mxu0 0.0
      %488 = vmatpush1.msra.mxu0 0.0
      %489 = vmatprep.subr.mxu0 0.0
      %490 = vmatpush1.msra.mxu0 0.0
      %491 = vmatprep.subr.mxu0 0.0
      %492 = vmatpush1.msra.mxu0 0.0
      %493 = vmatprep.subr.mxu0 0.0
      %494 = vmatpush1.msra.mxu0 0.0
      %495 = vmatprep.subr.mxu0 0.0
      %496 = vmatpush1.msra.mxu0 0.0
      %497 = vmatprep.subr.mxu0 0.0
      %498 = vmatpush1.msra.mxu0 0.0
      %499 = vmatprep.subr.mxu0 0.0
      %500 = vmatpush1.msra.mxu0 0.0
      %501 = vmatprep.subr.mxu0 0.0
      %502 = vmatpush1.msra.mxu0 0.0
      %503 = vmatprep.subr.mxu0 0.0
      %504 = vmatpush1.msra.mxu0 0.0
      %505 = vmatprep.subr.mxu0 0.0
      %506 = vmatpush1.msra.mxu0 0.0
      %507 = vmatprep.subr.mxu0 0.0
      %508 = vmatpush1.msra.mxu0 0.0
      %509 = vmatprep.subr.mxu0 0.0
      %510 = vmatpush1.msra.mxu0 0.0
      %511 = vmatprep.subr.mxu0 0.0
      %512 = vmatpush1.msra.mxu0 0.0
      %513 = vmatprep.subr.mxu0 0.0
      %514 = vmatpush1.msra.mxu0 0.0
      %515 = vmatprep.subr.mxu0 0.0
      %516 = vmatpush1.msra.mxu0 0.0
      %517 = vmatprep.subr.mxu0 0.0
      %518 = vmatpush1.msra.mxu0 0.0
      %519 = vmatprep.subr.mxu0 0.0
      %520 = vmatpush1.msra.mxu0 0.0
      %521 = vmatprep.subr.mxu0 0.0
      %522 = vmatpush1.msra.mxu0 0.0
      %523 = vmatprep.mubr.f32.mxu0 0.0
      %524 = vmatmul.mubr.f32.gmra.mrb[0].mxu0 %v448
      %v525 = vpop.f32.mrb[0].mxu0
      %v526 = vadd.f32 %v444, %v525
      %v527 = vpop.f32.mrb[0].mxu0
      %528 = vmatprep.mubr.f32.mxu0 0.0
      %529 = vmatmul.mubr.f32.gmra.mrb[0].mxu0 %v451
      %v530 = vpop.f32.mrb[0].mxu0
      %v531 = vadd.f32 %v444, %v530
      %v532 = vpop.f32.mrb[0].mxu0
      %533 = vmatprep.mubr.f32.mxu0 0.0
      %534 = vmatmul.mubr.f32.gmra.mrb[0].mxu0 %v454
      %v535 = vpop.f32.mrb[0].mxu0
      %v536 = vadd.f32 %v444, %v535
      %v537 = vpop.f32.mrb[0].mxu0
      %538 = vmatprep.mubr.f32.mxu0 0.0
      %539 = vmatmul.mubr.f32.gmra.mrb[0].mxu0 %v457
      %v540 = vpop.f32.mrb[0].mxu0
      %v541 = vadd.f32 %v444, %v540
      %v542 = vpop.f32.mrb[0].mxu0
      %543 = vdwg.mxu0
      %vm544 = vcmask 130048
      %v545 = vsel %vm544, %v526, -inf
      %vm546 = vcmask 123904
      %v547 = vsel %vm546, %v531, -inf
      %v548 = vmax.f32 %v545, %v547
      %v549 = vrot.slane %v548, 4
      %v550 = vmax.f32 %v548, %v549
      %v551 = vrot.slane %v550, 2
      %v552 = vmax.f32 %v550, %v551
      %v553 = vrot.slane %v552, 1
      %v554 = vmax.f32 %v552, %v553
      %v555 = vsel %vm544, %v536, -inf
      %vm556 = vcmask 125952
      %v557 = vsel %vm556, %v541, -inf
      %v558 = vmax.f32 %v555, %v557
      %v559 = vrot.slane %v558, 4
      %v560 = vmax.f32 %v558, %v559
      %v561 = vrot.slane %v560, 2
      %v562 = vmax.f32 %v560, %v561
      %v563 = vrot.slane %v562, 1
      %v564 = vmax.f32 %v562, %v563
      %v565 = vsel %vm279, %v554, %v564
      %v566 = vtanh.pop %v565
      %v568 = vrot.slane %v566, 1
      %v570 = vmul.f32 %v566, %v568
      %vm571 = vcmask 122880
      %v572 = vsel %vm571, %v570, 0.0
      %573 = vadd.xlane.f32.xlu0 %v572
      %v574 = vpop.xlane.xlu0 %573
      %v575 = vmul.f32 %v566, %v566
      %v576 = vsel %vm571, %v575, 0.0
      %577 = vadd.xlane.f32.xlu0 %v576
      %v578 = vpop.xlane.xlu0 %577
      %vm579 = vcmask 123905
      %v580 = vsel %vm579, %v575, 0.0
      %581 = vadd.xlane.f32.xlu0 %v580
      %v582 = vpop.xlane.xlu0 %581
      %v584 = vrot.slane %v582, 1
      %v586 = vmul.f32 %v578, %v584
      %v587 = vmax.f32 %v586, 1e-16
      %v588 = vrsqrt.pop %v587
      %v589 = vmul.f32 %v574, %v588
      %591 = vset.pattern.permute.xlu0 0
      %592 = vperm.xlu0 %591, %v589
      %v593 = vpop.permute.xlu0 %592
      %595 = vst [vmem:[%s217] sm:$0x1] %v593
      %p596 = scmp.lt.s32.totalorder %s15, 1
      %s597 = scalar_select %p596, %s15, 1
      %s598 = scalar_lea.vmem %s4, %s597
      // Predicated region
      $region37: #{classic_qa_forward.1} parent=35 // pred_check
        %p599 = pneg %p127
      $region38: #{classic_qa_forward.1} parent=35 // pred_check_branch
        %601 = sbr.rel (%p599) target = $region40
      $region39: #{classic_qa_forward.1} parent=35 // pred_region
        _
      $region40: #{classic_qa_forward.1} parent=35 // pred_fallthru
        _
    $region36: #{classic_qa_forward.1} parent=5 // pred_fallthru
      _
    %p602 = scmp.le.s32.totalorder 2, %s10
    // Predicated region
    $region41: #{classic_qa_forward.1} parent=5 // pred_check
      %p603 = pneg %p602
    $region42: #{classic_qa_forward.1} parent=5 // pred_check_branch
      %605 = sbr.rel (%p603) target = $region44
    $region43: #{classic_qa_forward.1} parent=5 // pred_region
      %s606 = ssub.s32 %s10, 2
      // Predicated region
      $region45: #{classic_qa_forward.1} parent=43 // pred_check
        %p607 = pneg %p133
      $region46: #{classic_qa_forward.1} parent=43 // pred_check_branch
        %609 = sbr.rel (%p607) target = $region48
      $region47: #{classic_qa_forward.1} parent=43 // pred_region
        %p610 = scmp.lt.s32.totalorder %s16, 1
        %s611 = scalar_select %p610, %s16, 1
        %s612 = scalar_lea.vmem %s4, %s611
      $region48: #{classic_qa_forward.1} parent=43 // pred_fallthru
        _
    $region44: #{classic_qa_forward.1} parent=5 // pred_fallthru
      _
  $region6: #{classic_qa_forward.1} parent=0 // loop_footer
    %s14 = sadd.s32 1, %s10
  $region7: #{classic_qa_forward.1} parent=0 // loop_footer_branch
    %9 = sbr.rel target = $region3
  $region8: #{classic_qa_forward.1} parent=0 // loop_exit
    _

</llo_original>
